<compile_context>
chip_gen: v7x
topology: tpu7x:2x2x1
jax: 0.10.0
libtpu: 0.0.40
codegen_flags: <defaults>
</compile_context>

<pallas_src>
from functools import partial

import jax
import jax.numpy as jnp
from jax import lax
from jax.experimental import pallas as pl
from jax.experimental.pallas import tpu as pltpu

EPS = 1e-5    # nn.BatchNorm2d default eps
LANE = 128    # pad channel dims to multiples of the lane width


def _round_up(x, m):
    return (x + m - 1) // m * m


def _pad_axis(a, axis, target):
    pad = [(0, 0)] * a.ndim
    pad[axis] = (0, target - a.shape[axis])
    return jnp.pad(a, pad)


# ----------------------------- kernels ---------------------------------------
def _accum_stats(stats_ref, h):
    """Accumulate per-channel sum / sum-of-squares (single pass) into (2, C)."""
    stats_ref[...] += jnp.concatenate(
        [jnp.sum(h, axis=0, keepdims=True),
         jnp.sum(h * h, axis=0, keepdims=True)], axis=0)


def conv1_kernel(x_ref, w1_ref, h1_ref, stats_ref):
    @pl.when(pl.program_id(0) == 0)
    def _():
        stats_ref[...] = jnp.zeros_like(stats_ref)
    x = x_ref[...].astype(jnp.bfloat16)
    h = jnp.dot(x, w1_ref[...], preferred_element_type=jnp.float32)
    h1_ref[...] = h.astype(jnp.bfloat16)
    _accum_stats(stats_ref, h)


def conv2_kernel(h1_ref, w2_ref, scale_ref, shift_ref, h2_ref, stats_ref,
                 *, hgt, wdt):
    @pl.when(pl.program_id(0) == 0)
    def _():
        stats_ref[...] = jnp.zeros_like(stats_ref)
    hw = hgt * wdt
    h = h1_ref[0].astype(jnp.float32)
    h = jnp.maximum(h * scale_ref[...] + shift_ref[...], 0.0)     # bn1 + relu

    # 3x3 / pad 1 / stride 1: 9 taps via sublane roll + boundary mask, fused
    # into one (HW, 9*P) @ (9*P, P) MXU matmul (per image => no cross-image
    # contamination from the roll wrap; wrapped rows are masked to zero).
    row = lax.broadcasted_iota(jnp.int32, (hw, 1), 0)
    hi = row // wdt
    wi = row % wdt
    taps = []
    for dh in (-1, 0, 1):
        for dw in (-1, 0, 1):
            off = dh * wdt + dw
            rolled = pltpu.roll(h, shift=(-off) % hw, axis=0) if off else h
            valid = ((hi + dh >= 0) & (hi + dh < hgt) &
                     (wi + dw >= 0) & (wi + dw < wdt))
            taps.append(jnp.where(valid, rolled, 0.0).astype(jnp.bfloat16))
    cat = jnp.concatenate(taps, axis=1)                           # (HW, 9*P)
    acc = jnp.dot(cat, w2_ref[...], preferred_element_type=jnp.float32)
    h2_ref[0] = acc.astype(jnp.bfloat16)
    _accum_stats(stats_ref, acc)


def conv3_kernel(h2_ref, w3_ref, scale_ref, shift_ref, h3_ref, stats_ref):
    @pl.when(pl.program_id(0) == 0)
    def _():
        stats_ref[...] = jnp.zeros_like(stats_ref)
    h = h2_ref[...].astype(jnp.float32)
    h = jnp.maximum(h * scale_ref[...] + shift_ref[...], 0.0)     # bn2 + relu
    acc = jnp.dot(h.astype(jnp.bfloat16), w3_ref[...],
                  preferred_element_type=jnp.float32)
    h3_ref[...] = acc.astype(jnp.bfloat16)
    _accum_stats(stats_ref, acc)


def finalize_kernel(h3_ref, x_ref, scale_ref, shift_ref, o_ref):
    h = h3_ref[...].astype(jnp.float32)
    h = h * scale_ref[...] + shift_ref[...]                       # bn3
    o_ref[...] = jnp.maximum(h + x_ref[...], 0.0)                 # residual+relu


# ----------------------------- wrapper ----------------------------------------
def _bn_scale_shift(stats, gamma, beta, count):
    mean = stats[0] / count
    var = jnp.maximum(stats[1] / count - mean * mean, 0.0)
    scale = gamma * lax.rsqrt(var + EPS)
    shift = beta - mean * scale
    return scale.reshape(1, -1), shift.reshape(1, -1)


def _row_tile(rows):
    # Demo-sized tile. Production: pick the largest row tile that fits VMEM
    # (e.g. 1024-4096 rows), halved on v7x (64 MiB VMEM/TC vs 128 MiB v5e/v6e).
    for cand in (256, 128, 64, 32, 16, 8):
        if rows % cand == 0:
            return cand
    return rows


def bottleneck_pc2_forward(x_nchw, params):
    n, cin, hgt, wdt = x_nchw.shape
    p = params["w1"].shape[0]
    cout = params["w3"].shape[0]
    assert cout == cin, "identity residual requires inplanes == planes * 4"
    hw = hgt * wdt
    rows = n * hw

    cinp = _round_up(cin, LANE)
    pp = _round_up(p, LANE)
    coutp = _round_up(cout, LANE)
    assert cinp == coutp

    # ---- layout prep: NCHW -> rows x channels, zero-pad channels, bf16 weights
    x_rows = jnp.transpose(x_nchw, (0, 2, 3, 1)).reshape(rows, cin)
    x_rows = _pad_axis(x_rows, 1, cinp).astype(jnp.float32)

    w1 = _pad_axis(_pad_axis(params["w1"][:, :, 0, 0].T, 0, cinp), 1, pp)
    w1 = w1.astype(jnp.bfloat16)                                   # (Cinp, Pp)
    w2 = jnp.transpose(params["w2"], (2, 3, 1, 0))                 # (3,3,Ci,Co)
    w2 = _pad_axis(_pad_axis(w2, 2, pp), 3, pp).reshape(9 * pp, pp)
    w2 = w2.astype(jnp.bfloat16)                                   # (9*Pp, Pp)
    w3 = _pad_axis(_pad_axis(params["w3"][:, :, 0, 0].T, 0, pp), 1, coutp)
    w3 = w3.astype(jnp.bfloat16)                                   # (Pp, Coutp)

    g1 = _pad_axis(params["g1"].astype(jnp.float32), 0, pp)
    b1 = _pad_axis(params["b1"].astype(jnp.float32), 0, pp)
    g2 = _pad_axis(params["g2"].astype(jnp.float32), 0, pp)
    b2 = _pad_axis(params["b2"].astype(jnp.float32), 0, pp)
    g3 = _pad_axis(params["g3"].astype(jnp.float32), 0, coutp)
    b3 = _pad_axis(params["b3"].astype(jnp.float32), 0, coutp)

    tile = _row_tile(rows)
    n_row = rows // tile
    cparams_acc = pltpu.CompilerParams(
        dimension_semantics=("arbitrary",),            # stats accumulator revisits
        vmem_limit_bytes=32 * 1024 * 1024)
    cparams_par = pltpu.CompilerParams(
        dimension_semantics=("parallel",),             # v7x: split over 2 TCs
        vmem_limit_bytes=32 * 1024 * 1024)

    # ---- stage A: conv1 (1x1) + bn1 batch stats ------------------------------
    h1, stats1 = pl.pallas_call(
        conv1_kernel,
        grid=(n_row,),
        in_specs=[pl.BlockSpec((tile, cinp), lambda i: (i, 0)),
                  pl.BlockSpec((cinp, pp), lambda i: (0, 0))],
        out_specs=(pl.BlockSpec((tile, pp), lambda i: (i, 0)),
                   pl.BlockSpec((2, pp), lambda i: (0, 0))),
        out_shape=(jax.ShapeDtypeStruct((rows, pp), jnp.bfloat16),
                   jax.ShapeDtypeStruct((2, pp), jnp.float32)),
        compiler_params=cparams_acc,
    )(x_rows, w1)
    s1, t1 = _bn_scale_shift(stats1, g1, b1, rows)

    # ---- stage B: bn1+relu, conv2 (3x3) + bn2 batch stats --------------------
    h2, stats2 = pl.pallas_call(
        partial(conv2_kernel, hgt=hgt, wdt=wdt),
        grid=(n,),
        in_specs=[pl.BlockSpec((1, hw, pp), lambda i: (i, 0, 0)),
                  pl.BlockSpec((9 * pp, pp), lambda i: (0, 0)),
                  pl.BlockSpec((1, pp), lambda i: (0, 0)),
                  pl.BlockSpec((1, pp), lambda i: (0, 0))],
        out_specs=(pl.BlockSpec((1, hw, pp), lambda i: (i, 0, 0)),
                   pl.BlockSpec((2, pp), lambda i: (0, 0))),
        out_shape=(jax.ShapeDtypeStruct((n, hw, pp), jnp.bfloat16),
                   jax.ShapeDtypeStruct((2, pp), jnp.float32)),
        compiler_params=cparams_acc,
    )(h1.reshape(n, hw, pp), w2, s1, t1)
    s2, t2 = _bn_scale_shift(stats2, g2, b2, rows)

    # ---- stage C: bn2+relu, conv3 (1x1) + bn3 batch stats --------------------
    h3, stats3 = pl.pallas_call(
        conv3_kernel,
        grid=(n_row,),
        in_specs=[pl.BlockSpec((tile, pp), lambda i: (i, 0)),
                  pl.BlockSpec((pp, coutp), lambda i: (0, 0)),
                  pl.BlockSpec((1, pp), lambda i: (0, 0)),
                  pl.BlockSpec((1, pp), lambda i: (0, 0))],
        out_specs=(pl.BlockSpec((tile, coutp), lambda i: (i, 0)),
                   pl.BlockSpec((2, coutp), lambda i: (0, 0))),
        out_shape=(jax.ShapeDtypeStruct((rows, coutp), jnp.bfloat16),
                   jax.ShapeDtypeStruct((2, coutp), jnp.float32)),
        compiler_params=cparams_acc,
    )(h2.reshape(rows, pp), w3, s2, t2)
    s3, t3 = _bn_scale_shift(stats3, g3, b3, rows)

    # ---- stage D: bn3 + identity residual + relu -----------------------------
    out_rows = pl.pallas_call(
        finalize_kernel,
        grid=(n_row,),
        in_specs=[pl.BlockSpec((tile, coutp), lambda i: (i, 0)),
                  pl.BlockSpec((tile, cinp), lambda i: (i, 0)),
                  pl.BlockSpec((1, coutp), lambda i: (0, 0)),
                  pl.BlockSpec((1, coutp), lambda i: (0, 0))],
        out_specs=pl.BlockSpec((tile, coutp), lambda i: (i, 0)),
        out_shape=jax.ShapeDtypeStruct((rows, coutp), jnp.float32),
        compiler_params=cparams_par,
    )(h3, x_rows, s3, t3)

    out = out_rows[:, :cout].reshape(n, hgt, wdt, cout)
    return jnp.transpose(out, (0, 3, 1, 2))


# ----------------------- pure-JAX reference (NCHW, like PyTorch) --------------
def reference_forward(x, params):
    def bn(y, g, b):
        m = y.mean(axis=(0, 2, 3), keepdims=True)
        v = ((y - m) ** 2).mean(axis=(0, 2, 3), keepdims=True)
        return ((y - m) / jnp.sqrt(v + EPS) * g.reshape(1, -1, 1, 1)
                + b.reshape(1, -1, 1, 1))

    dn = ("NCHW", "OIHW", "NCHW")
    hp = lax.Precision.HIGHEST
    out = lax.conv_general_dilated(x, params["w1"], (1, 1), "VALID",
                                   dimension_numbers=dn, precision=hp)
    out = jax.nn.relu(bn(out, params["g1"], params["b1"]))
    out = lax.conv_general_dilated(out, params["w2"], (1, 1), [(1, 1), (1, 1)],
                                   dimension_numbers=dn, precision=hp)
    out = jax.nn.relu(bn(out, params["g2"], params["b2"]))
    out = lax.conv_general_dilated(out, params["w3"], (1, 1), "VALID",
                                   dimension_numbers=dn, precision=hp)
    out = bn(out, params["g3"], params["b3"])
    return jax.nn.relu(out + x)


if __name__ == "__main__":
    # Small shapes consistent with the module: inplanes = planes * expansion
    N, planes, H, W = 2, 4, 16, 16
    inplanes = planes * 4          # BottleneckPC2.expansion = 4
    cout = planes * 4

    key = jax.random.PRNGKey(0)
    ks = jax.random.split(key, 9)
    params = {
        "w1": 0.2 * jax.random.normal(ks[0], (planes, inplanes, 1, 1), jnp.float32),
        "w2": 0.2 * jax.random.normal(ks[1], (planes, planes, 3, 3), jnp.float32),
        "w3": 0.2 * jax.random.normal(ks[2], (cout, planes, 1, 1), jnp.float32),
        "g1": 1.0 + 0.1 * jax.random.normal(ks[3], (planes,), jnp.float32),
        "b1": 0.1 * jax.random.normal(ks[4], (planes,), jnp.float32),
        "g2": 1.0 + 0.1 * jax.random.normal(ks[5], (planes,), jnp.float32),
        "b2": 0.1 * jax.random.normal(ks[6], (planes,), jnp.float32),
        "g3": 1.0 + 0.1 * jax.random.normal(ks[7], (cout,), jnp.float32),
        "b3": jnp.zeros((cout,), jnp.float32),
    }
    x = jax.random.normal(ks[8], (N, inplanes, H, W), jnp.float32)

    out = jax.block_until_ready(bottleneck_pc2_forward(x, params))
    ref = jax.block_until_ready(reference_forward(x, params))

    err = float(jnp.max(jnp.abs(out - ref)))
    scale = float(jnp.max(jnp.abs(ref)))
    assert out.shape == (N, cout, H, W), out.shape
    # bf16 MXU operands with f32 accumulation -> tolerance scaled to magnitude.
    assert err <= 1e-2 + 2e-2 * scale, f"max abs error {err} (ref max {scale})"
    print("KERNEL_OK")
</pallas_src>

<mosaic_0001>
module attributes {stable_mosaic.version = 11 : i64} {
  func.func @conv1_kernel(%arg0: i32, %arg1: memref<256x128xf32, #tpu.memory_space<vmem>>, %arg2: memref<128x128xbf16, #tpu.memory_space<vmem>>, %arg3: memref<256x128xbf16, #tpu.memory_space<vmem>>, %arg4: memref<2x128xf32, #tpu.memory_space<vmem>>) attributes {dimension_semantics = [#tpu.dimension_semantics<arbitrary>], iteration_bounds = array<i64: 2>, scalar_prefetch = 0 : i64, scratch_operands = 0 : i64, tpu.core_type = #tpu.core_type<tc>, window_params = [{transform_indices = @transform_0, window_bounds = array<i64: 256, 128>}, {pipeline_mode = #tpu.pipeline_mode<synchronous>, transform_indices = @transform_1, window_bounds = array<i64: 128, 128>}, {transform_indices = @transform_2, window_bounds = array<i64: 256, 128>}, {pipeline_mode = #tpu.pipeline_mode<synchronous>, transform_indices = @transform_3, window_bounds = array<i64: 2, 128>}]} {
    %c0_i32 = arith.constant 0 : i32
    %0 = arith.cmpi eq, %arg0, %c0_i32 : i32
    %1 = arith.extui %0 : i1 to i32
    %c0_i32_0 = arith.constant 0 : i32
    %2 = arith.cmpi ne, %1, %c0_i32_0 : i32
    scf.if %2 {
      %cst_12 = arith.constant 0.000000e+00 : f32
      %18 = vector.broadcast %cst_12 : f32 to vector<2x128xf32>
      %c0_13 = arith.constant 0 : index
      %c0_14 = arith.constant 0 : index
      %19 = vector.load %arg4[%c0_13, %c0_14] : memref<2x128xf32, #tpu.memory_space<vmem>>, vector<2x128xf32>
      tpu.vector_store %arg4[%c0_13, %c0_14], %18 {strides = array<i32>} : memref<2x128xf32, #tpu.memory_space<vmem>>, vector<2x128xf32>,
    } else {
    }
    %c0 = arith.constant 0 : index
    %c0_1 = arith.constant 0 : index
    %3 = vector.load %arg1[%c0, %c0_1] : memref<256x128xf32, #tpu.memory_space<vmem>>, vector<256x128xf32>
    %4 = arith.truncf %3 : vector<256x128xf32> to vector<256x128xbf16>
    %c0_2 = arith.constant 0 : index
    %c0_3 = arith.constant 0 : index
    %5 = vector.load %arg2[%c0_2, %c0_3] : memref<128x128xbf16, #tpu.memory_space<vmem>>, vector<128x128xbf16>
    %cst = arith.constant dense<0.000000e+00> : vector<256x128xf32>
    %6 = tpu.matmul %4, %5, %cst {dimension_numbers = #tpu.dot_dimension_numbers<[1], [0], [0], [1], [0, 0, 1, 1], [], []>} : vector<256x128xbf16>, vector<128x128xbf16>, vector<256x128xf32> -> vector<256x128xf32>
    %7 = arith.truncf %6 : vector<256x128xf32> to vector<256x128xbf16>
    %c0_4 = arith.constant 0 : index
    %c0_5 = arith.constant 0 : index
    %8 = vector.load %arg3[%c0_4, %c0_5] : memref<256x128xbf16, #tpu.memory_space<vmem>>, vector<256x128xbf16>
    tpu.vector_store %arg3[%c0_4, %c0_5], %7 {strides = array<i32>} : memref<256x128xbf16, #tpu.memory_space<vmem>>, vector<256x128xbf16>,
    %c0_6 = arith.constant 0 : index
    %c0_7 = arith.constant 0 : index
    %9 = vector.load %arg4[%c0_6, %c0_7] : memref<2x128xf32, #tpu.memory_space<vmem>>, vector<2x128xf32>
    %cst_8 = arith.constant dense<0.000000e+00> : vector<128xf32>
    %10 = vector.multi_reduction <add>, %6, %cst_8 [0] : vector<256x128xf32> to vector<128xf32>
    %11 = vector.shape_cast %10 : vector<128xf32> to vector<1x128xf32>
    %12 = arith.mulf %6, %6 : vector<256x128xf32>
    %cst_9 = arith.constant dense<0.000000e+00> : vector<128xf32>
    %13 = vector.multi_reduction <add>, %12, %cst_9 [0] : vector<256x128xf32> to vector<128xf32>
    %14 = vector.shape_cast %13 : vector<128xf32> to vector<1x128xf32>
    %15 = tpu.concatenate %11, %14 in 0 : vector<1x128xf32>, vector<1x128xf32> -> vector<2x128xf32>
    %16 = arith.addf %9, %15 : vector<2x128xf32>
    %c0_10 = arith.constant 0 : index
    %c0_11 = arith.constant 0 : index
    %17 = vector.load %arg4[%c0_10, %c0_11] : memref<2x128xf32, #tpu.memory_space<vmem>>, vector<2x128xf32>
    tpu.vector_store %arg4[%c0_10, %c0_11], %16 {strides = array<i32>} : memref<2x128xf32, #tpu.memory_space<vmem>>, vector<2x128xf32>,
    return
  }
  func.func @transform_0(%arg0: i32) -> (i32, i32) {
    %c0_i32 = arith.constant 0 : i32
    %c0_i32_0 = arith.constant 0 : i32
    return %arg0, %c0_i32 : i32, i32
  }
  func.func @transform_1(%arg0: i32) -> (i32, i32) {
    %c0_i32 = arith.constant 0 : i32
    %c0_i32_0 = arith.constant 0 : i32
    %c0_i32_1 = arith.constant 0 : i32
    return %c0_i32, %c0_i32_0 : i32, i32
  }
  func.func @transform_2(%arg0: i32) -> (i32, i32) {
    %c0_i32 = arith.constant 0 : i32
    %c0_i32_0 = arith.constant 0 : i32
    return %arg0, %c0_i32 : i32, i32
  }
  func.func @transform_3(%arg0: i32) -> (i32, i32) {
    %c0_i32 = arith.constant 0 : i32
    %c0_i32_0 = arith.constant 0 : i32
    %c0_i32_1 = arith.constant 0 : i32
    return %c0_i32, %c0_i32_0 : i32, i32
  }
}

</mosaic_0001>

<llo_original>
// kernel: tpu_custom_call.1
$region0: #{tpu_custom_call.1}
  #allocation0 [shape = 'u32[]', space=smem, size = 0x4, offset = 0x4, fixed_abs, tag = 'smem constant byte address 0x4 - core index']
  #allocation1 [shape = 'u32[144,128]{1,0:T(1,128)}', space=vmem, size = 0x12000, scoped, tag = 'internal scratch']
  %s0 = inlined_call_operand.hbm [shape: f32[512,128], index: 0, kind: input, shape index: {}]
  %s1 = inlined_call_operand.hbm [shape: bf16[128,128], index: 1, kind: input, shape index: {}]
  %s2 = inlined_call_operand.hbm [shape: bf16[512,128], index: 2, kind: output, shape index: {0}]
  %s3 = inlined_call_operand.hbm [shape: f32[2,128], index: 3, kind: output, shape index: {1}]
  %4 = xla_tuple %s2, %s3
  %s5 = sld [smem:[#allocation0]]
  $region61: #{tpu_custom_call.1} parent=0
    _
  %s7 = ssub.s32 1, %s5
  %s8 = scalar_select 0, %s7, %s5
  $region1: #{tpu_custom_call.1} parent=0
    #allocation2 [shape = 'u8[262144]{0}', space=vmem, size = 0x40000, scoped, tag = 'input window, operand 0']
    #allocation3 [shape = 's32[2]{0}', space=sflag, size = 0x8, scoped, tag = 'scoped memory for tpu_custom_call.1']
    #allocation4 [shape = 's32[2]{0}', space=sflag, size = 0x8, scoped, tag = 'scoped memory for tpu_custom_call.1']
    #allocation5 [shape = 'u8[32768]{0}', space=vmem, size = 0x8000, scoped, tag = 'input window, operand 1, single buffered']
    #allocation6 [shape = 's32[1]{0}', space=sflag, size = 0x4, scoped, tag = 'scoped memory for tpu_custom_call.1']
    #allocation7 [shape = 'u8[131072]{0}', space=vmem, size = 0x20000, scoped, tag = 'output window, operand 0']
    #allocation8 [shape = 'u8[1024]{0}', space=vmem, size = 0x400, scoped, tag = 'output window, operand 1, single buffered']
    #allocation9 [shape = 's32[1]{0}', space=sflag, size = 0x4, scoped, tag = 'scoped memory for tpu_custom_call.1']
    %9 = vsyncpa [#allocation3], 0
    %s10 = scalar_lea.sflag [#allocation3], 1
    %11 = vsyncpa %s10, 0
    %12 = vsyncpa [#allocation6], 0
    %13 = vsyncpa [#allocation4], 0
    %s14 = scalar_lea.sflag [#allocation4], 1
    %15 = vsyncpa %s14, 0
    %16 = vsyncpa [#allocation9], 0
    loop: start=0, step=1, limit=4
    $region2: #{tpu_custom_call.1} parent=1 // loop_pre_header
      _
    $region3: #{tpu_custom_call.1} parent=1 // loop_header
      %s18 = sphi 0, %s22
      %p19 = scmp.ge.s32.totalorder %s18, 4
      %s28 = sphi 0, %s30
      %s31 = sphi 0, %s28
      %s32 = sphi 0, %s31
      %s48 = sphi 0, %s32
      %s52 = sphi 0, %s52
      %s54 = sphi 0, %s52
      %s55 = sphi 0, %s54
      %s69 = sphi 0, %s55
      %s75 = sphi 0, %s77
      %s78 = sphi 0, %s75
      %s79 = sphi 0, %s78
      %s95 = sphi 0, %s79
      %s99 = sphi 0, %s99
      %s101 = sphi 0, %s99
      %s102 = sphi 0, %s101
      %s116 = sphi 0, %s102
    $region4: #{tpu_custom_call.1} parent=1 // loop_header_branch
      %21 = sbr.rel (%p19) target = $region8
    $region5: #{tpu_custom_call.1} parent=1 // loop_body
      %s23 = ssub.s32 %s18, 1
      %s24 = ssub.s32 %s18, 2
      %s25 = sadd.s32 %s18, 1
      %s26 = ssub.s32 %s18, %s25
      %p27 = scmp.eq.s32.totalorder %s26, 0
      %s29 = sadd.s32 %s28, 1
      %s30 = scalar_select %p27, %s28, %s29
      %p33 = pneg %p27
      %p34 = scmp.eq.s32.totalorder %s18, 1
      %p35 = por %p33, %p34
      %p36 = scmp.ne.s32.totalorder %s28, %s31
      %p37 = scmp.eq.s32.totalorder %s18, 0
      %p38 = por %p36, %p37
      %p39 = scmp.ne.s32.totalorder %s28, %s31
      %p40 = scmp.eq.s32.totalorder %s23, 1
      %p41 = por %p39, %p40
      %p42 = scmp.ne.s32.totalorder %s31, %s32
      %p43 = scmp.eq.s32.totalorder %s23, 0
      %p44 = por %p42, %p43
      %p45 = scmp.ne.s32.totalorder %s31, %s32
      %p46 = scmp.eq.s32.totalorder %s24, 1
      %p47 = por %p45, %p46
      %p49 = scmp.ne.s32.totalorder %s32, %s48
      %p50 = scmp.eq.s32.totalorder %s24, 0
      %p51 = por %p49, %p50
      %s53 = sadd.s32 %s52, 1
      %p56 = scmp.eq.s32.totalorder %s18, 1
      %p57 = scmp.ne.s32.totalorder %s52, %s54
      %p58 = scmp.eq.s32.totalorder %s18, 0
      %p59 = por %p57, %p58
      %p60 = scmp.ne.s32.totalorder %s52, %s54
      %p61 = scmp.eq.s32.totalorder %s23, 1
      %p62 = por %p60, %p61
      %p63 = scmp.ne.s32.totalorder %s54, %s55
      %p64 = scmp.eq.s32.totalorder %s23, 0
      %p65 = por %p63, %p64
      %p66 = scmp.ne.s32.totalorder %s54, %s55
      %p67 = scmp.eq.s32.totalorder %s24, 1
      %p68 = por %p66, %p67
      %p70 = scmp.ne.s32.totalorder %s55, %s69
      %p71 = scmp.eq.s32.totalorder %s24, 0
      %p72 = por %p70, %p71
      %s73 = ssub.s32 %s18, %s25
      %p74 = scmp.eq.s32.totalorder %s73, 0
      %s76 = sadd.s32 %s75, 1
      %s77 = scalar_select %p74, %s75, %s76
      %p80 = pneg %p74
      %p81 = scmp.eq.s32.totalorder %s18, 1
      %p82 = por %p80, %p81
      %p83 = scmp.ne.s32.totalorder %s75, %s78
      %p84 = scmp.eq.s32.totalorder %s18, 0
      %p85 = por %p83, %p84
      %p86 = scmp.ne.s32.totalorder %s75, %s78
      %p87 = scmp.eq.s32.totalorder %s23, 1
      %p88 = por %p86, %p87
      %p89 = scmp.ne.s32.totalorder %s78, %s79
      %p90 = scmp.eq.s32.totalorder %s23, 0
      %p91 = por %p89, %p90
      %p92 = scmp.ne.s32.totalorder %s78, %s79
      %p93 = scmp.eq.s32.totalorder %s24, 1
      %p94 = por %p92, %p93
      %p96 = scmp.ne.s32.totalorder %s79, %s95
      %p97 = scmp.eq.s32.totalorder %s24, 0
      %p98 = por %p96, %p97
      %s100 = sadd.s32 %s99, 1
      %p103 = scmp.eq.s32.totalorder %s18, 1
      %p104 = scmp.ne.s32.totalorder %s99, %s101
      %p105 = scmp.eq.s32.totalorder %s18, 0
      %p106 = por %p104, %p105
      %p107 = scmp.ne.s32.totalorder %s99, %s101
      %p108 = scmp.eq.s32.totalorder %s23, 1
      %p109 = por %p107, %p108
      %p110 = scmp.ne.s32.totalorder %s101, %s102
      %p111 = scmp.eq.s32.totalorder %s23, 0
      %p112 = por %p110, %p111
      %p113 = scmp.ne.s32.totalorder %s101, %s102
      %p114 = scmp.eq.s32.totalorder %s24, 1
      %p115 = por %p113, %p114
      %p117 = scmp.ne.s32.totalorder %s102, %s116
      %p118 = scmp.eq.s32.totalorder %s24, 0
      %p119 = por %p117, %p118
      %p120 = scmp.le.s32.totalorder 1, %s18
      %p121 = scmp.lt.s32.totalorder %s18, 3
      %p122 = pnand %p120, %p121
      %p123 = pneg %p122
      // Predicated region
      $region9: #{tpu_custom_call.1} parent=5 // pred_check
        _
      $region10: #{tpu_custom_call.1} parent=5 // pred_check_branch
        %125 = sbr.rel (%p122) target = $region12
      $region11: #{tpu_custom_call.1} parent=5 // pred_region
        %s126 = ssub.s32 %s18, 1
        // Predicated region
        $region13: #{tpu_custom_call.1} parent=11 // pred_check
          %p127 = pneg %p65
        $region14: #{tpu_custom_call.1} parent=11 // pred_check_branch
          %129 = sbr.rel (%p127) target = $region16
        $region15: #{tpu_custom_call.1} parent=11 // pred_region
          %s131 = ssub.s32 1024, 1024
          %132 = vsyncadd [#allocation6], %s131
          %s133 = sshll.u32 [#allocation5], 4
          %s134 = int_to_ptr.vmem [resolvable:$true] %s133
          %139 = dma.hbm_to_vmem [thread:$0]  %s1, 1024, %s134, [#allocation6], 64, 64, 4
        $region16: #{tpu_custom_call.1} parent=11 // pred_fallthru
          _
      $region12: #{tpu_custom_call.1} parent=5 // pred_fallthru
        _
      %p140 = scmp.lt.s32.totalorder %s18, 2
      // Predicated region
      $region17: #{tpu_custom_call.1} parent=5 // pred_check
        %p141 = pneg %p140
      $region18: #{tpu_custom_call.1} parent=5 // pred_check_branch
        %143 = sbr.rel (%p141) target = $region20
      $region19: #{tpu_custom_call.1} parent=5 // pred_region
        // Predicated region
        $region21: #{tpu_custom_call.1} parent=19 // pred_check
          %p144 = pneg %p38
        $region22: #{tpu_custom_call.1} parent=19 // pred_check_branch
          %146 = sbr.rel (%p144) target = $region24
        $region23: #{tpu_custom_call.1} parent=19 // pred_region
          %s147 = sand.u32 %s28, 1
          %s148 = scalar_lea.sflag [#allocation3], %s147
          %s149 = sand.u32 %s28, 1
          %s150 = smul.addr %s149, 256
          %s151 = scalar_lea.vmem [#allocation2], %s150
          %s152 = smul.u32 32, %s18
          %s154 = ssub.s32 4096, 4096
          %155 = vsyncadd %s148, %s154
          %s156 = smul.addr %s152, 128
          %s157 = scalar_lea.hbm %s0, %s156
          %s158 = sshll.u32 %s151, 4
          %s159 = int_to_ptr.vmem [resolvable:$true] %s158
          %164 = dma.hbm_to_vmem [thread:$0]  %s157, 4096, %s159, %s148, 128, 128, 8
        $region24: #{tpu_custom_call.1} parent=19 // pred_fallthru
          _
      $region20: #{tpu_custom_call.1} parent=5 // pred_fallthru
        _
      %p165 = scmp.le.s32.totalorder 1, %s18
      %p166 = scmp.lt.s32.totalorder %s18, 3
      %p167 = pnand %p165, %p166
      %p168 = pneg %p167
      // Predicated region
      $region25: #{tpu_custom_call.1} parent=5 // pred_check
        _
      $region26: #{tpu_custom_call.1} parent=5 // pred_check_branch
        %170 = sbr.rel (%p167) target = $region28
      $region27: #{tpu_custom_call.1} parent=5 // pred_region
        %s171 = ssub.s32 %s18, 1
        %s172 = sand.u32 %s31, 1
        %s173 = scalar_lea.sflag [#allocation3], %s172
        %s174 = sand.u32 %s31, 1
        %s175 = smul.addr %s174, 256
        %s176 = scalar_lea.vmem [#allocation2], %s175
        // Predicated region
        $region29: #{tpu_custom_call.1} parent=27 // pred_check
          %p177 = pneg %p44
        $region30: #{tpu_custom_call.1} parent=27 // pred_check_branch
          %179 = sbr.rel (%p177) target = $region32
        $region31: #{tpu_custom_call.1} parent=27 // pred_region
          %180 = dma.done %s173, 4096
        $region32: #{tpu_custom_call.1} parent=27 // pred_fallthru
          _
        // Predicated region
        $region33: #{tpu_custom_call.1} parent=27 // pred_check
          %p181 = pneg %p65
        $region34: #{tpu_custom_call.1} parent=27 // pred_check_branch
          %183 = sbr.rel (%p181) target = $region36
        $region35: #{tpu_custom_call.1} parent=27 // pred_region
          %184 = dma.done [#allocation6], 1024
        $region36: #{tpu_custom_call.1} parent=27 // pred_fallthru
          _
        %s185 = sand.u32 %s31, 1
        %s186 = scalar_lea.sflag [#allocation3], %s185
        %s187 = sand.u32 %s31, 1
        %s188 = smul.addr %s187, 256
        %s189 = scalar_lea.vmem [#allocation2], %s188
        %p190 = pneg %p44
        %p191 = pneg %p41
        %p192 = pneg %p65
        %p193 = pneg %p62
        %p194 = pneg %p91
        %p195 = pneg %p88
        %s196 = sand.u32 %s78, 1
        %s197 = scalar_lea.sflag [#allocation4], %s196
        %s198 = sand.u32 %s78, 1
        %s199 = smul.addr %s198, 128
        %s200 = scalar_lea.vmem [#allocation7], %s199
        %p201 = pneg %p112
        %p202 = pneg %p109
        %s203 = smul.u32 32, %s23
        %s204 = smul.u32 32, %s23
        %p206 = scmp.eq.s32.totalorder %s23, 0
        // Predicated region
        $region37: #{tpu_custom_call.1} parent=27 // pred_check
          %p207 = pneg %p206
        $region38: #{tpu_custom_call.1} parent=27 // pred_check_branch
          %209 = sbr.rel (%p207) target = $region40
        $region39: #{tpu_custom_call.1} parent=27 // pred_region
          %210 = vst [vmem:[#allocation8] sm:$0x3] 0.0
        $region40: #{tpu_custom_call.1} parent=27 // pred_fallthru
          _
        %v211 = vld [vmem:[%s176] sm:$0xff]
        %v212 = vld [vmem:[%s176 + $0x8] sm:$0xff]
        %v213 = vld [vmem:[%s176 + $0x10] sm:$0xff]
        %v214 = vld [vmem:[%s176 + $0x18] sm:$0xff]
        %v215 = vld [vmem:[%s176 + $0x20] sm:$0xff]
        %v216 = vld [vmem:[%s176 + $0x28] sm:$0xff]
        %v217 = vld [vmem:[%s176 + $0x30] sm:$0xff]
        %v218 = vld [vmem:[%s176 + $0x38] sm:$0xff]
        %v219 = vld [vmem:[%s176 + $0x40] sm:$0xff]
        %v220 = vld [vmem:[%s176 + $0x48] sm:$0xff]
        %v221 = vld [vmem:[%s176 + $0x50] sm:$0xff]
        %v222 = vld [vmem:[%s176 + $0x58] sm:$0xff]
        %v223 = vld [vmem:[%s176 + $0x60] sm:$0xff]
        %v224 = vld [vmem:[%s176 + $0x68] sm:$0xff]
        %v225 = vld [vmem:[%s176 + $0x70] sm:$0xff]
        %v226 = vld [vmem:[%s176 + $0x78] sm:$0xff]
        %v227 = vld [vmem:[%s176 + $0x80] sm:$0xff]
        %v228 = vld [vmem:[%s176 + $0x88] sm:$0xff]
        %v229 = vld [vmem:[%s176 + $0x90] sm:$0xff]
        %v230 = vld [vmem:[%s176 + $0x98] sm:$0xff]
        %v231 = vld [vmem:[%s176 + $0xa0] sm:$0xff]
        %v232 = vld [vmem:[%s176 + $0xa8] sm:$0xff]
        %v233 = vld [vmem:[%s176 + $0xb0] sm:$0xff]
        %v234 = vld [vmem:[%s176 + $0xb8] sm:$0xff]
        %v235 = vld [vmem:[%s176 + $0xc0] sm:$0xff]
        %v236 = vld [vmem:[%s176 + $0xc8] sm:$0xff]
        %v237 = vld [vmem:[%s176 + $0xd0] sm:$0xff]
        %v238 = vld [vmem:[%s176 + $0xd8] sm:$0xff]
        %v239 = vld [vmem:[%s176 + $0xe0] sm:$0xff]
        %v240 = vld [vmem:[%s176 + $0xe8] sm:$0xff]
        %v241 = vld [vmem:[%s176 + $0xf0] sm:$0xff]
        %v242 = vld [vmem:[%s176 + $0xf8] sm:$0xff]
        %v243 = vpack.c.bf16 %v212, %v211
        %v244 = vpack.c.bf16 %v214, %v213
        %v245 = vpack.c.bf16 %v216, %v215
        %v246 = vpack.c.bf16 %v218, %v217
        %v247 = vpack.c.bf16 %v220, %v219
        %v248 = vpack.c.bf16 %v222, %v221
        %v249 = vpack.c.bf16 %v224, %v223
        %v250 = vpack.c.bf16 %v226, %v225
        %v251 = vpack.c.bf16 %v228, %v227
        %v252 = vpack.c.bf16 %v230, %v229
        %v253 = vpack.c.bf16 %v232, %v231
        %v254 = vpack.c.bf16 %v234, %v233
        %v255 = vpack.c.bf16 %v236, %v235
        %v256 = vpack.c.bf16 %v238, %v237
        %v257 = vpack.c.bf16 %v240, %v239
        %v258 = vpack.c.bf16 %v242, %v241
        %v259 = vld [vmem:[#allocation5] sm:$0xf]
        %v260 = vld [vmem:[#allocation5 + $0x4] sm:$0xf]
        %v261 = vld [vmem:[#allocation5 + $0x8] sm:$0xf]
        %v262 = vld [vmem:[#allocation5 + $0xc] sm:$0xf]
        %v263 = vld [vmem:[#allocation5 + $0x10] sm:$0xf]
        %v264 = vld [vmem:[#allocation5 + $0x14] sm:$0xf]
        %v265 = vld [vmem:[#allocation5 + $0x18] sm:$0xf]
        %v266 = vld [vmem:[#allocation5 + $0x1c] sm:$0xf]
        %v267 = vld [vmem:[#allocation5 + $0x20] sm:$0xf]
        %v268 = vld [vmem:[#allocation5 + $0x24] sm:$0xf]
        %v269 = vld [vmem:[#allocation5 + $0x28] sm:$0xf]
        %v270 = vld [vmem:[#allocation5 + $0x2c] sm:$0xf]
        %v271 = vld [vmem:[#allocation5 + $0x30] sm:$0xf]
        %v272 = vld [vmem:[#allocation5 + $0x34] sm:$0xf]
        %v273 = vld [vmem:[#allocation5 + $0x38] sm:$0xf]
        %v274 = vld [vmem:[#allocation5 + $0x3c] sm:$0xf]
        %v291 = vunpack.c.l.b16 %v259
        %v292 = vunpack.c.l.b16 %v260
        %v293 = vunpack.c.l.b16 %v261
        %v294 = vunpack.c.l.b16 %v262
        %v295 = vunpack.c.l.b16 %v263
        %v296 = vunpack.c.l.b16 %v264
        %v297 = vunpack.c.l.b16 %v265
        %v298 = vunpack.c.l.b16 %v266
        %v299 = vunpack.c.l.b16 %v267
        %v300 = vunpack.c.l.b16 %v268
        %v301 = vunpack.c.l.b16 %v269
        %v302 = vunpack.c.l.b16 %v270
        %v303 = vunpack.c.l.b16 %v271
        %v304 = vunpack.c.l.b16 %v272
        %v305 = vunpack.c.l.b16 %v273
        %v306 = vunpack.c.l.b16 %v274
        %v307 = vpack.c.b16 %v292, %v291
        %v308 = vpack.c.b16 %v294, %v293
        %v309 = vpack.c.b16 %v296, %v295
        %v310 = vpack.c.b16 %v298, %v297
        %v311 = vpack.c.b16 %v300, %v299
        %v312 = vpack.c.b16 %v302, %v301
        %v313 = vpack.c.b16 %v304, %v303
        %v314 = vpack.c.b16 %v306, %v305
        %323 = vmatprep.subr.bf16.mxu0 0
        %324 = vmatpush1.bf16.msra.mxu0 %v307
        %325 = vmatprep.subr.bf16.mxu0 0
        %326 = vmatpush1.bf16.msra.mxu0 %v308
        %327 = vmatprep.subr.bf16.mxu0 0
        %328 = vmatpush1.bf16.msra.mxu0 %v309
        %329 = vmatprep.subr.bf16.mxu0 0
        %330 = vmatpush1.bf16.msra.mxu0 %v310
        %331 = vmatprep.subr.bf16.mxu0 0
        %332 = vmatpush1.bf16.msra.mxu0 %v311
        %333 = vmatprep.subr.bf16.mxu0 0
        %334 = vmatpush1.bf16.msra.mxu0 %v312
        %335 = vmatprep.subr.bf16.mxu0 0
        %336 = vmatpush1.bf16.msra.mxu0 %v313
        %337 = vmatprep.subr.bf16.mxu0 0
        %338 = vmatpush1.bf16.msra.mxu0 %v314
        %339 = vmatprep.subr.bf16.mxu0 0
        %340 = vmatpush1.bf16.msra.mxu0 0
        %341 = vmatprep.subr.bf16.mxu0 0
        %342 = vmatpush1.bf16.msra.mxu0 0
        %343 = vmatprep.subr.bf16.mxu0 0
        %344 = vmatpush1.bf16.msra.mxu0 0
        %345 = vmatprep.subr.bf16.mxu0 0
        %346 = vmatpush1.bf16.msra.mxu0 0
        %347 = vmatprep.subr.bf16.mxu0 0
        %348 = vmatpush1.bf16.msra.mxu0 0
        %349 = vmatprep.subr.bf16.mxu0 0
        %350 = vmatpush1.bf16.msra.mxu0 0
        %351 = vmatprep.subr.bf16.mxu0 0
        %352 = vmatpush1.bf16.msra.mxu0 0
        %353 = vmatprep.subr.bf16.mxu0 0
        %354 = vmatpush1.bf16.msra.mxu0 0
        %355 = vmatprep.mubr.bf16.mxu0 0
        %356 = vmatmul.mubr.bf16.gmra.mrb[0].mxu0 %v243
        %v357 = vpop.f32.mrb[0].mxu0
        %v358 = vadd.f32 0.0, %v357
        %v359 = vpop.f32.mrb[0].mxu0
        %v360 = vpop.f32.mrb[0].mxu0
        %v361 = vadd.f32 0.0, %v360
        %v362 = vpop.f32.mrb[0].mxu0
        %363 = vmatprep.mubr.bf16.mxu0 0
        %364 = vmatmul.mubr.bf16.gmra.mrb[0].mxu0 %v244
        %v365 = vpop.f32.mrb[0].mxu0
        %v366 = vadd.f32 0.0, %v365
        %v367 = vpop.f32.mrb[0].mxu0
        %v368 = vpop.f32.mrb[0].mxu0
        %v369 = vadd.f32 0.0, %v368
        %v370 = vpop.f32.mrb[0].mxu0
        %371 = vmatprep.mubr.bf16.mxu0 0
        %372 = vmatmul.mubr.bf16.gmra.mrb[0].mxu0 %v245
        %v373 = vpop.f32.mrb[0].mxu0
        %v374 = vadd.f32 0.0, %v373
        %v375 = vpop.f32.mrb[0].mxu0
        %v376 = vpop.f32.mrb[0].mxu0
        %v377 = vadd.f32 0.0, %v376
        %v378 = vpop.f32.mrb[0].mxu0
        %379 = vmatprep.mubr.bf16.mxu0 0
        %380 = vmatmul.mubr.bf16.gmra.mrb[0].mxu0 %v246
        %v381 = vpop.f32.mrb[0].mxu0
        %v382 = vadd.f32 0.0, %v381
        %v383 = vpop.f32.mrb[0].mxu0
        %v384 = vpop.f32.mrb[0].mxu0
        %v385 = vadd.f32 0.0, %v384
        %v386 = vpop.f32.mrb[0].mxu0
        %387 = vmatprep.mubr.bf16.mxu0 0
        %388 = vmatmul.mubr.bf16.gmra.mrb[0].mxu0 %v247
        %v389 = vpop.f32.mrb[0].mxu0
        %v390 = vadd.f32 0.0, %v389
        %v391 = vpop.f32.mrb[0].mxu0
        %v392 = vpop.f32.mrb[0].mxu0
        %v393 = vadd.f32 0.0, %v392
        %v394 = vpop.f32.mrb[0].mxu0
        %395 = vmatprep.mubr.bf16.mxu0 0
        %396 = vmatmul.mubr.bf16.gmra.mrb[0].mxu0 %v248
        %v397 = vpop.f32.mrb[0].mxu0
        %v398 = vadd.f32 0.0, %v397
        %v399 = vpop.f32.mrb[0].mxu0
        %v400 = vpop.f32.mrb[0].mxu0
        %v401 = vadd.f32 0.0, %v400
        %v402 = vpop.f32.mrb[0].mxu0
        %403 = vmatprep.mubr.bf16.mxu0 0
        %404 = vmatmul.mubr.bf16.gmra.mrb[0].mxu0 %v249
        %v405 = vpop.f32.mrb[0].mxu0
        %v406 = vadd.f32 0.0, %v405
        %v407 = vpop.f32.mrb[0].mxu0
        %v408 = vpop.f32.mrb[0].mxu0
        %v409 = vadd.f32 0.0, %v408
        %v410 = vpop.f32.mrb[0].mxu0
        %411 = vmatprep.mubr.bf16.mxu0 0
        %412 = vmatmul.mubr.bf16.gmra.mrb[0].mxu0 %v250
        %v413 = vpop.f32.mrb[0].mxu0
        %v414 = vadd.f32 0.0, %v413
        %v415 = vpop.f32.mrb[0].mxu0
        %v416 = vpop.f32.mrb[0].mxu0
        %v417 = vadd.f32 0.0, %v416
        %v418 = vpop.f32.mrb[0].mxu0
        %419 = vmatprep.mubr.bf16.mxu0 0
        %420 = vmatmul.mubr.bf16.gmra.mrb[0].mxu0 %v251
        %v421 = vpop.f32.mrb[0].mxu0
        %v422 = vadd.f32 0.0, %v421
        %v423 = vpop.f32.mrb[0].mxu0
        %v424 = vpop.f32.mrb[0].mxu0
        %v425 = vadd.f32 0.0, %v424
        %v426 = vpop.f32.mrb[0].mxu0
        %427 = vmatprep.mubr.bf16.mxu0 0
        %428 = vmatmul.mubr.bf16.gmra.mrb[0].mxu0 %v252
        %v429 = vpop.f32.mrb[0].mxu0
        %v430 = vadd.f32 0.0, %v429
        %v431 = vpop.f32.mrb[0].mxu0
        %v432 = vpop.f32.mrb[0].mxu0
        %v433 = vadd.f32 0.0, %v432
        %v434 = vpop.f32.mrb[0].mxu0
        %435 = vmatprep.mubr.bf16.mxu0 0
        %436 = vmatmul.mubr.bf16.gmra.mrb[0].mxu0 %v253
        %v437 = vpop.f32.mrb[0].mxu0
        %v438 = vadd.f32 0.0, %v437
        %v439 = vpop.f32.mrb[0].mxu0
        %v440 = vpop.f32.mrb[0].mxu0
        %v441 = vadd.f32 0.0, %v440
        %v442 = vpop.f32.mrb[0].mxu0
        %443 = vmatprep.mubr.bf16.mxu0 0
        %444 = vmatmul.mubr.bf16.gmra.mrb[0].mxu0 %v254
        %v445 = vpop.f32.mrb[0].mxu0
        %v446 = vadd.f32 0.0, %v445
        %v447 = vpop.f32.mrb[0].mxu0
        %v448 = vpop.f32.mrb[0].mxu0
        %v449 = vadd.f32 0.0, %v448
        %v450 = vpop.f32.mrb[0].mxu0
        %451 = vmatprep.mubr.bf16.mxu0 0
        %452 = vmatmul.mubr.bf16.gmra.mrb[0].mxu0 %v255
        %v453 = vpop.f32.mrb[0].mxu0
        %v454 = vadd.f32 0.0, %v453
        %v455 = vpop.f32.mrb[0].mxu0
        %v456 = vpop.f32.mrb[0].mxu0
        %v457 = vadd.f32 0.0, %v456
        %v458 = vpop.f32.mrb[0].mxu0
        %459 = vmatprep.mubr.bf16.mxu0 0
        %460 = vmatmul.mubr.bf16.gmra.mrb[0].mxu0 %v256
        %v461 = vpop.f32.mrb[0].mxu0
        %v462 = vadd.f32 0.0, %v461
        %v463 = vpop.f32.mrb[0].mxu0
        %v464 = vpop.f32.mrb[0].mxu0
        %v465 = vadd.f32 0.0, %v464
        %v466 = vpop.f32.mrb[0].mxu0
        %467 = vmatprep.mubr.bf16.mxu0 0
        %468 = vmatmul.mubr.bf16.gmra.mrb[0].mxu0 %v257
        %v469 = vpop.f32.mrb[0].mxu0
        %v470 = vadd.f32 0.0, %v469
        %v471 = vpop.f32.mrb[0].mxu0
        %v472 = vpop.f32.mrb[0].mxu0
        %v473 = vadd.f32 0.0, %v472
        %v474 = vpop.f32.mrb[0].mxu0
        %475 = vmatprep.mubr.bf16.mxu0 0
        %476 = vmatmul.mubr.bf16.gmra.mrb[0].mxu0 %v258
        %v477 = vpop.f32.mrb[0].mxu0
        %v478 = vadd.f32 0.0, %v477
        %v479 = vpop.f32.mrb[0].mxu0
        %v480 = vpop.f32.mrb[0].mxu0
        %v481 = vadd.f32 0.0, %v480
        %v482 = vpop.f32.mrb[0].mxu0
        %483 = vdwg.mxu0
        %v484 = vpack.c.bf16 %v361, %v358
        %v485 = vpack.c.bf16 %v369, %v366
        %v486 = vpack.c.bf16 %v377, %v374
        %v487 = vpack.c.bf16 %v385, %v382
        %v488 = vpack.c.bf16 %v393, %v390
        %v489 = vpack.c.bf16 %v401, %v398
        %v490 = vpack.c.bf16 %v409, %v406
        %v491 = vpack.c.bf16 %v417, %v414
        %v492 = vpack.c.bf16 %v425, %v422
        %v493 = vpack.c.bf16 %v433, %v430
        %v494 = vpack.c.bf16 %v441, %v438
        %v495 = vpack.c.bf16 %v449, %v446
        %v496 = vpack.c.bf16 %v457, %v454
        %v497 = vpack.c.bf16 %v465, %v462
        %v498 = vpack.c.bf16 %v473, %v470
        %v499 = vpack.c.bf16 %v481, %v478
        %v516 = vunpack.c.l.b16 %v484
        %v517 = vunpack.c.h.b16 %v484
        %v518 = vunpack.c.l.b16 %v485
        %v519 = vunpack.c.h.b16 %v485
        %v520 = vunpack.c.l.b16 %v486
        %v521 = vunpack.c.h.b16 %v486
        %v522 = vunpack.c.l.b16 %v487
        %v523 = vunpack.c.h.b16 %v487
        %v524 = vunpack.c.l.b16 %v488
        %v525 = vunpack.c.h.b16 %v488
        %v526 = vunpack.c.l.b16 %v489
        %v527 = vunpack.c.h.b16 %v489
        %v528 = vunpack.c.l.b16 %v490
        %v529 = vunpack.c.h.b16 %v490
        %v530 = vunpack.c.l.b16 %v491
        %v531 = vunpack.c.h.b16 %v491
        %v532 = vunpack.c.l.b16 %v492
        %v533 = vunpack.c.h.b16 %v492
        %v534 = vunpack.c.l.b16 %v493
        %v535 = vunpack.c.h.b16 %v493
        %v536 = vunpack.c.l.b16 %v494
        %v537 = vunpack.c.h.b16 %v494
        %v538 = vunpack.c.l.b16 %v495
        %v539 = vunpack.c.h.b16 %v495
        %v540 = vunpack.c.l.b16 %v496
        %v541 = vunpack.c.h.b16 %v496
        %v542 = vunpack.c.l.b16 %v497
        %v543 = vunpack.c.h.b16 %v497
        %v544 = vunpack.c.l.b16 %v498
        %v545 = vunpack.c.h.b16 %v498
        %v546 = vunpack.c.l.b16 %v499
        %v547 = vunpack.c.h.b16 %v499
        %v548 = vpack.c.b16 %v516, %v516
        %v549 = vpack.c.b16 %v517, %v517
        %v550 = vpack.c.b16 %v518, %v518
        %v551 = vpack.c.b16 %v519, %v519
        %v552 = vpack.c.b16 %v520, %v520
        %v553 = vpack.c.b16 %v521, %v521
        %v554 = vpack.c.b16 %v522, %v522
        %v555 = vpack.c.b16 %v523, %v523
        %v556 = vpack.c.b16 %v524, %v524
        %v557 = vpack.c.b16 %v525, %v525
        %v558 = vpack.c.b16 %v526, %v526
        %v559 = vpack.c.b16 %v527, %v527
        %v560 = vpack.c.b16 %v528, %v528
        %v561 = vpack.c.b16 %v529, %v529
        %v562 = vpack.c.b16 %v530, %v530
        %v563 = vpack.c.b16 %v531, %v531
        %v564 = vpack.c.b16 %v532, %v532
        %v565 = vpack.c.b16 %v533, %v533
        %v566 = vpack.c.b16 %v534, %v534
        %v567 = vpack.c.b16 %v535, %v535
        %v568 = vpack.c.b16 %v536, %v536
        %v569 = vpack.c.b16 %v537, %v537
        %v570 = vpack.c.b16 %v538, %v538
        %v571 = vpack.c.b16 %v539, %v539
        %v572 = vpack.c.b16 %v540, %v540
        %v573 = vpack.c.b16 %v541, %v541
        %v574 = vpack.c.b16 %v542, %v542
        %v575 = vpack.c.b16 %v543, %v543
        %v576 = vpack.c.b16 %v544, %v544
        %v577 = vpack.c.b16 %v545, %v545
        %v578 = vpack.c.b16 %v546, %v546
        %v579 = vpack.c.b16 %v547, %v547
        %612 = vst [vmem:[%s200] sm:$0xf] %v548
        %613 = vst [vmem:[%s200 + $0x4] sm:$0xf] %v549
        %614 = vst [vmem:[%s200 + $0x8] sm:$0xf] %v550
        %615 = vst [vmem:[%s200 + $0xc] sm:$0xf] %v551
        %616 = vst [vmem:[%s200 + $0x10] sm:$0xf] %v552
        %617 = vst [vmem:[%s200 + $0x14] sm:$0xf] %v553
        %618 = vst [vmem:[%s200 + $0x18] sm:$0xf] %v554
        %619 = vst [vmem:[%s200 + $0x1c] sm:$0xf] %v555
        %620 = vst [vmem:[%s200 + $0x20] sm:$0xf] %v556
        %621 = vst [vmem:[%s200 + $0x24] sm:$0xf] %v557
        %622 = vst [vmem:[%s200 + $0x28] sm:$0xf] %v558
        %623 = vst [vmem:[%s200 + $0x2c] sm:$0xf] %v559
        %624 = vst [vmem:[%s200 + $0x30] sm:$0xf] %v560
        %625 = vst [vmem:[%s200 + $0x34] sm:$0xf] %v561
        %626 = vst [vmem:[%s200 + $0x38] sm:$0xf] %v562
        %627 = vst [vmem:[%s200 + $0x3c] sm:$0xf] %v563
        %628 = vst [vmem:[%s200 + $0x40] sm:$0xf] %v564
        %629 = vst [vmem:[%s200 + $0x44] sm:$0xf] %v565
        %630 = vst [vmem:[%s200 + $0x48] sm:$0xf] %v566
        %631 = vst [vmem:[%s200 + $0x4c] sm:$0xf] %v567
        %632 = vst [vmem:[%s200 + $0x50] sm:$0xf] %v568
        %633 = vst [vmem:[%s200 + $0x54] sm:$0xf] %v569
        %634 = vst [vmem:[%s200 + $0x58] sm:$0xf] %v570
        %635 = vst [vmem:[%s200 + $0x5c] sm:$0xf] %v571
        %636 = vst [vmem:[%s200 + $0x60] sm:$0xf] %v572
        %637 = vst [vmem:[%s200 + $0x64] sm:$0xf] %v573
        %638 = vst [vmem:[%s200 + $0x68] sm:$0xf] %v574
        %639 = vst [vmem:[%s200 + $0x6c] sm:$0xf] %v575
        %640 = vst [vmem:[%s200 + $0x70] sm:$0xf] %v576
        %641 = vst [vmem:[%s200 + $0x74] sm:$0xf] %v577
        %642 = vst [vmem:[%s200 + $0x78] sm:$0xf] %v578
        %643 = vst [vmem:[%s200 + $0x7c] sm:$0xf] %v579
        %v644 = vld [vmem:[#allocation8] sm:$0x3]
        %v645 = vadd.f32 %v358, %v361
        %v646 = vadd.f32 %v645, %v366
        %v647 = vadd.f32 %v646, %v369
        %v648 = vadd.f32 %v647, %v374
        %v649 = vadd.f32 %v648, %v377
        %v650 = vadd.f32 %v649, %v382
        %v651 = vadd.f32 %v650, %v385
        %v652 = vadd.f32 %v651, %v390
        %v653 = vadd.f32 %v652, %v393
        %v654 = vadd.f32 %v653, %v398
        %v655 = vadd.f32 %v654, %v401
        %v656 = vadd.f32 %v655, %v406
        %v657 = vadd.f32 %v656, %v409
        %v658 = vadd.f32 %v657, %v414
        %v659 = vadd.f32 %v658, %v417
        %v660 = vadd.f32 %v659, %v422
        %v661 = vadd.f32 %v660, %v425
        %v662 = vadd.f32 %v661, %v430
        %v663 = vadd.f32 %v662, %v433
        %v664 = vadd.f32 %v663, %v438
        %v665 = vadd.f32 %v664, %v441
        %v666 = vadd.f32 %v665, %v446
        %v667 = vadd.f32 %v666, %v449
        %v668 = vadd.f32 %v667, %v454
        %v669 = vadd.f32 %v668, %v457
        %v670 = vadd.f32 %v669, %v462
        %v671 = vadd.f32 %v670, %v465
        %v672 = vadd.f32 %v671, %v470
        %v673 = vadd.f32 %v672, %v473
        %v674 = vadd.f32 %v673, %v478
        %v675 = vadd.f32 %v674, %v481
        %v676 = vrot.slane %v675, 4
        %v677 = vadd.f32 %v675, %v676
        %v678 = vrot.slane %v677, 2
        %v679 = vadd.f32 %v677, %v678
        %v680 = vrot.slane %v679, 1
        %v681 = vadd.f32 %v679, %v680
        %v682 = vmul.f32 %v358, %v358
        %v683 = vmul.f32 %v361, %v361
        %v684 = vmul.f32 %v366, %v366
        %v685 = vmul.f32 %v369, %v369
        %v686 = vmul.f32 %v374, %v374
        %v687 = vmul.f32 %v377, %v377
        %v688 = vmul.f32 %v382, %v382
        %v689 = vmul.f32 %v385, %v385
        %v690 = vmul.f32 %v390, %v390
        %v691 = vmul.f32 %v393, %v393
        %v692 = vmul.f32 %v398, %v398
        %v693 = vmul.f32 %v401, %v401
        %v694 = vmul.f32 %v406, %v406
        %v695 = vmul.f32 %v409, %v409
        %v696 = vmul.f32 %v414, %v414
        %v697 = vmul.f32 %v417, %v417
        %v698 = vmul.f32 %v422, %v422
        %v699 = vmul.f32 %v425, %v425
        %v700 = vmul.f32 %v430, %v430
        %v701 = vmul.f32 %v433, %v433
        %v702 = vmul.f32 %v438, %v438
        %v703 = vmul.f32 %v441, %v441
        %v704 = vmul.f32 %v446, %v446
        %v705 = vmul.f32 %v449, %v449
        %v706 = vmul.f32 %v454, %v454
        %v707 = vmul.f32 %v457, %v457
        %v708 = vmul.f32 %v462, %v462
        %v709 = vmul.f32 %v465, %v465
        %v710 = vmul.f32 %v470, %v470
        %v711 = vmul.f32 %v473, %v473
        %v712 = vmul.f32 %v478, %v478
        %v713 = vmul.f32 %v481, %v481
        %v714 = vadd.f32 %v682, %v683
        %v715 = vadd.f32 %v714, %v684
        %v716 = vadd.f32 %v715, %v685
        %v717 = vadd.f32 %v716, %v686
        %v718 = vadd.f32 %v717, %v687
        %v719 = vadd.f32 %v718, %v688
        %v720 = vadd.f32 %v719, %v689
        %v721 = vadd.f32 %v720, %v690
        %v722 = vadd.f32 %v721, %v691
        %v723 = vadd.f32 %v722, %v692
        %v724 = vadd.f32 %v723, %v693
        %v725 = vadd.f32 %v724, %v694
        %v726 = vadd.f32 %v725, %v695
        %v727 = vadd.f32 %v726, %v696
        %v728 = vadd.f32 %v727, %v697
        %v729 = vadd.f32 %v728, %v698
        %v730 = vadd.f32 %v729, %v699
        %v731 = vadd.f32 %v730, %v700
        %v732 = vadd.f32 %v731, %v701
        %v733 = vadd.f32 %v732, %v702
        %v734 = vadd.f32 %v733, %v703
        %v735 = vadd.f32 %v734, %v704
        %v736 = vadd.f32 %v735, %v705
        %v737 = vadd.f32 %v736, %v706
        %v738 = vadd.f32 %v737, %v707
        %v739 = vadd.f32 %v738, %v708
        %v740 = vadd.f32 %v739, %v709
        %v741 = vadd.f32 %v740, %v710
        %v742 = vadd.f32 %v741, %v711
        %v743 = vadd.f32 %v742, %v712
        %v744 = vadd.f32 %v743, %v713
        %v745 = vrot.slane %v744, 4
        %v746 = vadd.f32 %v744, %v745
        %v747 = vrot.slane %v746, 2
        %v748 = vadd.f32 %v746, %v747
        %v749 = vrot.slane %v748, 1
        %v750 = vadd.f32 %v748, %v749
        %vm751 = vcmask 1040384
        %v752 = vsel %vm751, %v681, %v750
        %v753 = vadd.f32 %v644, %v752
        %754 = vst [vmem:[#allocation8] sm:$0x3] %v753
        %s755 = sand.u32 %s78, 1
        %s756 = scalar_lea.sflag [#allocation4], %s755
        %s757 = sand.u32 %s78, 1
        %s758 = smul.addr %s757, 128
        %s759 = scalar_lea.vmem [#allocation7], %s758
        // Predicated region
        $region41: #{tpu_custom_call.1} parent=27 // pred_check
          %p760 = pneg %p88
        $region42: #{tpu_custom_call.1} parent=27 // pred_check_branch
          %762 = sbr.rel (%p760) target = $region44
        $region43: #{tpu_custom_call.1} parent=27 // pred_region
          %s763 = smul.u32 32, %s23
          %s765 = ssub.s32 2048, 2048
          %766 = vsyncadd %s756, %s765
          %s767 = smul.addr %s763, 64
          %s768 = scalar_lea.hbm %s2, %s767
          %s769 = sshll.u32 %s759, 4
          %s770 = int_to_ptr.vmem [resolvable:$true] %s769
          %775 = dma.vmem_to_hbm [thread:$0]  %s770, 2048, %s768, %s756, 64, 64, 4
        $region44: #{tpu_custom_call.1} parent=27 // pred_fallthru
          _
        // Predicated region
        $region45: #{tpu_custom_call.1} parent=27 // pred_check
          %p776 = pneg %p109
        $region46: #{tpu_custom_call.1} parent=27 // pred_check_branch
          %778 = sbr.rel (%p776) target = $region48
        $region47: #{tpu_custom_call.1} parent=27 // pred_region
          %s780 = ssub.s32 32, 32
          %781 = vsyncadd [#allocation9], %s780
          %s783 = sshll.u32 [#allocation8], 4
          %s784 = int_to_ptr.vmem [resolvable:$true] %s783
          %786 = dma.vmem_to_hbm [thread:$0]  %s784, 32, %s3, [#allocation9]
        $region48: #{tpu_custom_call.1} parent=27 // pred_fallthru
          _
        // Predicated region
        $region49: #{tpu_custom_call.1} parent=27 // pred_check
          %p787 = pneg %p109
        $region50: #{tpu_custom_call.1} parent=27 // pred_check_branch
          %789 = sbr.rel (%p787) target = $region52
        $region51: #{tpu_custom_call.1} parent=27 // pred_region
          %790 = dma.done [#allocation9], 32
        $region52: #{tpu_custom_call.1} parent=27 // pred_fallthru
          _
      $region28: #{tpu_custom_call.1} parent=5 // pred_fallthru
        _
      %p791 = scmp.le.s32.totalorder 2, %s18
      // Predicated region
      $region53: #{tpu_custom_call.1} parent=5 // pred_check
        %p792 = pneg %p791
      $region54: #{tpu_custom_call.1} parent=5 // pred_check_branch
        %794 = sbr.rel (%p792) target = $region56
      $region55: #{tpu_custom_call.1} parent=5 // pred_region
        %s795 = ssub.s32 %s18, 2
        // Predicated region
        $region57: #{tpu_custom_call.1} parent=55 // pred_check
          %p796 = pneg %p94
        $region58: #{tpu_custom_call.1} parent=55 // pred_check_branch
          %798 = sbr.rel (%p796) target = $region60
        $region59: #{tpu_custom_call.1} parent=55 // pred_region
          %s799 = sand.u32 %s79, 1
          %s800 = scalar_lea.sflag [#allocation4], %s799
          %s801 = sand.u32 %s79, 1
          %s802 = smul.addr %s801, 128
          %s803 = scalar_lea.vmem [#allocation7], %s802
          %804 = dma.done %s800, 2048
        $region60: #{tpu_custom_call.1} parent=55 // pred_fallthru
          _
      $region56: #{tpu_custom_call.1} parent=5 // pred_fallthru
        _
    $region6: #{tpu_custom_call.1} parent=1 // loop_footer
      %s22 = sadd.s32 1, %s18
    $region7: #{tpu_custom_call.1} parent=1 // loop_footer_branch
      %17 = sbr.rel target = $region3
    $region8: #{tpu_custom_call.1} parent=1 // loop_exit
      _
    %805 = vsyncpa [#allocation3], 1
    %s806 = scalar_lea.sflag [#allocation3], 1
    %807 = vsyncpa %s806, 1
    %808 = vsyncpa [#allocation6], 1
    %809 = vsyncpa [#allocation4], 1
    %s810 = scalar_lea.sflag [#allocation4], 1
    %811 = vsyncpa %s810, 1
    %812 = vsyncpa [#allocation9], 1

</llo_original>
